<compile_context>
chip_gen: v5e
topology: v5e:2x2
jax: 0.10.0
libtpu: 0.0.40
codegen_flags: <defaults>
</compile_context>

<pallas_src>
import functools
import math

import jax
import jax.numpy as jnp
from jax import lax
from jax.experimental import pallas as pl
from jax.experimental.pallas import tpu as pltpu


# ----------------------------- Linear kernel -----------------------------

def _linear_kernel(x_ref, w_ref, b_ref, o_ref, *, compute_dtype):
    # x_ref: (tm, K)  w_ref: (K, tn)  b_ref: (1, tn)  o_ref: (tm, tn)
    x = x_ref[...].astype(compute_dtype)
    w = w_ref[...].astype(compute_dtype)
    acc = jnp.dot(x, w, preferred_element_type=jnp.float32)
    o_ref[...] = (acc + b_ref[...]).astype(o_ref.dtype)


def linear(x, w, b, *, out_dtype=None, compute_dtype=None, tm=256, tn=512,
           vmem_limit_bytes=None):
    """y = x @ w + b.  x: (M, K), w: (K, N) (already transposed), b: (N,)."""
    M, K = x.shape
    K2, N = w.shape
    assert K == K2
    out_dtype = out_dtype or x.dtype
    compute_dtype = compute_dtype or w.dtype
    tm = min(tm, M)
    tn = min(tn, N)
    b2 = b.reshape(1, N).astype(jnp.float32)

    return pl.pallas_call(
        functools.partial(_linear_kernel, compute_dtype=compute_dtype),
        out_shape=jax.ShapeDtypeStruct((M, N), out_dtype),
        grid_spec=pltpu.PrefetchScalarGridSpec(
            num_scalar_prefetch=0,
            grid=(pl.cdiv(M, tm), pl.cdiv(N, tn)),
            in_specs=[
                pl.BlockSpec((tm, K), lambda i, j: (i, 0)),   # activations
                pl.BlockSpec((K, tn), lambda i, j: (0, j)),   # weight (N-tiled)
                pl.BlockSpec((1, tn), lambda i, j: (0, j)),   # bias
            ],
            out_specs=pl.BlockSpec((tm, tn), lambda i, j: (i, j)),
        ),
        compiler_params=pltpu.CompilerParams(
            dimension_semantics=("parallel", "parallel"),
            vmem_limit_bytes=vmem_limit_bytes),
    )(x, w, b2)


# --------------------------- Attention kernel -----------------------------

def _mha_attention_kernel(*refs, h, d_k, scale, has_mask, has_attn,
                          approx_recip):
    # refs: q, k, v, [mask], o, [attn]
    q_ref, k_ref, v_ref = refs[0], refs[1], refs[2]
    i = 3
    mask_ref = refs[i] if has_mask else None
    if has_mask:
        i += 1
    o_ref = refs[i]
    attn_ref = refs[i + 1] if has_attn else None

    q = q_ref[0]                                            # (S, D)
    k = k_ref[0]                                            # (S, D)
    v = v_ref[0]                                            # (S, D)
    if has_mask:
        masked_out = mask_ref[0] == 0                       # (S, S) bool

    # Static (unrolled) head loop: q/k/v stay VMEM-resident across heads,
    # each head is a static lane slice (lane-aligned for d_k >= 128).
    for hh in range(h):
        sl = slice(hh * d_k, (hh + 1) * d_k)
        qh, kh, vh = q[:, sl], k[:, sl], v[:, sl]

        # scores = (q @ k^T) * 1/sqrt(d_k) -- contract last dims, f32 acc.
        s = lax.dot_general(qh, kh, (((1,), (1,)), ((), ())),
                            preferred_element_type=jnp.float32) * scale
        if has_mask:
            s = jnp.where(masked_out, jnp.float32(-1e9), s)

        # Numerically-stable softmax, normalization deferred to the ctx tile.
        m = jnp.max(s, axis=-1, keepdims=True)
        p = jnp.exp(s - m)                                  # unnormalized probs
        denom = jnp.sum(p, axis=-1, keepdims=True)
        inv = pl.reciprocal(denom, approx=approx_recip)     # EUP slot

        ctxh = jnp.dot(p.astype(vh.dtype), vh,
                       preferred_element_type=jnp.float32)  # (S, d_k)
        o_ref[0, :, sl] = (ctxh * inv).astype(o_ref.dtype)
        if has_attn:
            attn_ref[0, hh] = (p * inv).astype(attn_ref.dtype)


# ------------------------------- Wrapper ----------------------------------

def prepare_params(params, compute_dtype=jnp.bfloat16):
    """One-time parameter prep: transpose + cast weights, fuse QKV weight."""
    wq, bq, wk, bk, wv, bv, wo, bo = params
    cd = compute_dtype
    wq_t = jnp.asarray(wq).T.astype(cd)                     # (D, D)
    wk_t = jnp.asarray(wk).T.astype(cd)
    wv_t = jnp.asarray(wv).T.astype(cd)
    wo_t = jnp.asarray(wo).T.astype(cd)
    return dict(
        compute_dtype=cd,
        wq_t=wq_t, bq=jnp.asarray(bq, jnp.float32),
        wk_t=wk_t, bk=jnp.asarray(bk, jnp.float32),
        wv_t=wv_t, bv=jnp.asarray(bv, jnp.float32),
        wo_t=wo_t, bo=jnp.asarray(bo, jnp.float32),
        w_qkv=jnp.concatenate([wq_t, wk_t, wv_t], axis=1),  # (D, 3D)
        b_qkv=jnp.concatenate([jnp.asarray(bq), jnp.asarray(bk),
                               jnp.asarray(bv)]).astype(jnp.float32),
    )


def multi_head_attention(q, k, v, mask, prepared, *, h, return_attn=False):
    """Pallas equivalent of MultiHeadAttentionBlock.forward (intended semantics)."""
    cd = prepared["compute_dtype"]
    B, S, D = q.shape
    assert D % h == 0, "d_model not divisible by h"
    d_k = D // h
    M = B * S

    # ---- input projections (weights pre-transposed; no per-call .T) ----
    if (q is k) and (k is v):
        # self-attention: fused QKV projection (activations read once).
        qkv = linear(q.reshape(M, D), prepared["w_qkv"], prepared["b_qkv"],
                     out_dtype=cd, compute_dtype=cd)
        qp = qkv[:, :D].reshape(B, S, D)
        kp = qkv[:, D:2 * D].reshape(B, S, D)
        vp = qkv[:, 2 * D:].reshape(B, S, D)
    else:
        qp = linear(q.reshape(M, D), prepared["wq_t"], prepared["bq"],
                    out_dtype=cd, compute_dtype=cd).reshape(B, S, D)
        kp = linear(k.reshape(M, D), prepared["wk_t"], prepared["bk"],
                    out_dtype=cd, compute_dtype=cd).reshape(B, S, D)
        vp = linear(v.reshape(M, D), prepared["wv_t"], prepared["bv"],
                    out_dtype=cd, compute_dtype=cd).reshape(B, S, D)

    # ---- mask -> int8, keep batch dim 1 when broadcastable ----
    mask_i8 = None
    if mask is not None:
        m = jnp.asarray(mask)
        if m.ndim == 2:                         # (S, S)
            m = m[None]
        elif m.ndim == 4:                       # (B,1,S,S) or (B,1,1,S)
            m = m[:, 0]
        if m.shape[-2] == 1:                    # (.., 1, S) -> (.., S, S)
            m = jnp.broadcast_to(m, m.shape[:-2] + (S, S))
        mask_i8 = (m != 0).astype(jnp.int8)     # (Bm, S, S), Bm in {1, B}
    has_mask = mask_i8 is not None
    mask_batched = has_mask and mask_i8.shape[0] != 1

    scale = 1.0 / math.sqrt(d_k)
    approx = cd == jnp.bfloat16                  # exact recip on the f32 path

    in_specs = [
        pl.BlockSpec((1, S, D), lambda b: (b, 0, 0)),
        pl.BlockSpec((1, S, D), lambda b: (b, 0, 0)),
        pl.BlockSpec((1, S, D), lambda b: (b, 0, 0)),
    ]
    inputs = [qp, kp, vp]
    if has_mask:
        if mask_batched:
            in_specs.append(pl.BlockSpec((1, S, S), lambda b: (b, 0, 0)))
        else:
            in_specs.append(pl.BlockSpec((1, S, S), lambda b: (0, 0, 0)))
        inputs.append(mask_i8)

    if return_attn:
        out_shape = (jax.ShapeDtypeStruct((B, S, D), cd),
                     jax.ShapeDtypeStruct((B, h, S, S), cd))
        out_specs = [pl.BlockSpec((1, S, D), lambda b: (b, 0, 0)),
                     pl.BlockSpec((1, h, S, S), lambda b: (b, 0, 0, 0))]
    else:
        out_shape = jax.ShapeDtypeStruct((B, S, D), cd)
        out_specs = pl.BlockSpec((1, S, D), lambda b: (b, 0, 0))

    kernel = functools.partial(
        _mha_attention_kernel, h=h, d_k=d_k, scale=scale,
        has_mask=has_mask, has_attn=return_attn, approx_recip=approx)

    res = pl.pallas_call(
        kernel,
        out_shape=out_shape,
        grid_spec=pltpu.PrefetchScalarGridSpec(
            num_scalar_prefetch=0,
            grid=(B,),
            in_specs=in_specs,
            out_specs=out_specs,
        ),
        compiler_params=pltpu.CompilerParams(
            dimension_semantics=("parallel",)),
    )(*inputs)

    if return_attn:
        ctx, attn = res
    else:
        ctx, attn = res, None

    # ---- head merge is a free reshape; output projection ----
    out = linear(ctx.reshape(M, D), prepared["wo_t"], prepared["bo"],
                 out_dtype=q.dtype, compute_dtype=cd).reshape(B, S, D)
    if return_attn:
        return out, attn
    return out


# ----------------------------- Pure-JAX ref --------------------------------

def mha_reference(q, k, v, mask, params, *, h):
    wq, bq, wk, bk, wv, bv, wo, bo = params
    B, S, D = q.shape
    d_k = D // h
    query = q @ wq.T + bq
    key_p = k @ wk.T + bk
    value = v @ wv.T + bv

    def split(xp):
        return xp.reshape(B, S, h, d_k).transpose(0, 2, 1, 3)

    qh, kh, vh = split(query), split(key_p), split(value)
    scores = jnp.einsum('bhqd,bhkd->bhqk', qh, kh) / math.sqrt(d_k)
    if mask is not None:
        m = jnp.asarray(mask, jnp.float32)
        if m.ndim == 2:
            m = m[None]
        m = jnp.broadcast_to(m, (B, S, S))[:, None]
        scores = jnp.where(m == 0, jnp.float32(-1e9), scores)
    attn = jax.nn.softmax(scores, axis=-1)
    ctx = jnp.einsum('bhqk,bhkd->bhqd', attn, vh)
    x = ctx.transpose(0, 2, 1, 3).reshape(B, S, D)
    return x @ wo.T + bo, attn


# --------------------------------- Main ------------------------------------

if __name__ == "__main__":
    batch, seq, d_model, h = 2, 8, 32, 4

    key = jax.random.PRNGKey(0)
    keys = jax.random.split(key, 12)

    def lin_init(kw, kb, fan_in, out_f, in_f):
        bound = 1.0 / math.sqrt(fan_in)
        w = jax.random.uniform(kw, (out_f, in_f), jnp.float32, -bound, bound)
        b = jax.random.uniform(kb, (out_f,), jnp.float32, -bound, bound)
        return w, b

    wq, bq = lin_init(keys[0], keys[1], d_model, d_model, d_model)
    wk, bk = lin_init(keys[2], keys[3], d_model, d_model, d_model)
    wv, bv = lin_init(keys[4], keys[5], d_model, d_model, d_model)
    wo, bo = lin_init(keys[6], keys[7], d_model, d_model, d_model)
    params = (wq, bq, wk, bk, wv, bv, wo, bo)

    q = jax.random.normal(keys[8], (batch, seq, d_model), jnp.float32)
    k = jax.random.normal(keys[9], (batch, seq, d_model), jnp.float32)
    v = jax.random.normal(keys[10], (batch, seq, d_model), jnp.float32)
    x = jax.random.normal(keys[11], (batch, seq, d_model), jnp.float32)

    causal = jnp.tril(jnp.ones((seq, seq), jnp.float32))         # (S, S)

    # 1) exactness check: f32 compute path, distinct q/k/v, attn probs kept.
    prep_f32 = prepare_params(params, jnp.float32)
    out1, attn1 = multi_head_attention(q, k, v, causal, prep_f32, h=h,
                                       return_attn=True)
    out1 = jax.block_until_ready(out1)
    ref_out1, ref_attn1 = mha_reference(q, k, v, causal, params, h=h)
    assert out1.shape == (batch, seq, d_model)
    assert attn1.shape == (batch, h, seq, seq)
    assert jnp.allclose(out1, ref_out1, atol=1e-3, rtol=1e-3)
    assert jnp.allclose(attn1, ref_attn1, atol=1e-3, rtol=1e-3)

    # 2) perf path: bf16 MXU, fused QKV (self-attention), no attn materialized.
    prep_bf16 = prepare_params(params, jnp.bfloat16)
    out2 = multi_head_attention(x, x, x, causal, prep_bf16, h=h)
    out2 = jax.block_until_ready(out2)
    ref_out2, _ = mha_reference(x, x, x, causal, params, h=h)
    assert out2.dtype == x.dtype
    assert jnp.allclose(out2, ref_out2, atol=5e-2, rtol=5e-2)

    # 3) mask=None branch (no mask input at all).
    out3 = multi_head_attention(q, k, v, None, prep_f32, h=h)
    out3 = jax.block_until_ready(out3)
    ref_out3, _ = mha_reference(q, k, v, None, params, h=h)
    assert jnp.allclose(out3, ref_out3, atol=1e-3, rtol=1e-3)

    print("KERNEL_OK")
</pallas_src>

<mosaic_0001>
module attributes {stable_mosaic.version = 11 : i64} {
  func.func @_linear_kernel(%arg0: i32, %arg1: i32, %arg2: memref<16x32xf32, #tpu.memory_space<vmem>>, %arg3: memref<32x32xf32, #tpu.memory_space<vmem>>, %arg4: memref<1x32xf32, #tpu.memory_space<vmem>>, %arg5: memref<16x32xf32, #tpu.memory_space<vmem>>) attributes {dimension_semantics = [#tpu.dimension_semantics<parallel>, #tpu.dimension_semantics<parallel>], iteration_bounds = array<i64: 1, 1>, scalar_prefetch = 0 : i64, scratch_operands = 0 : i64, tpu.core_type = #tpu.core_type<tc>, window_params = [{transform_indices = @transform_0, window_bounds = array<i64: 16, 32>}, {transform_indices = @transform_1, window_bounds = array<i64: 32, 32>}, {transform_indices = @transform_2, window_bounds = array<i64: 1, 32>}, {transform_indices = @transform_3, window_bounds = array<i64: 16, 32>}]} {
    %c0 = arith.constant 0 : index
    %c0_0 = arith.constant 0 : index
    %0 = vector.load %arg2[%c0, %c0_0] : memref<16x32xf32, #tpu.memory_space<vmem>>, vector<16x32xf32>
    %c0_1 = arith.constant 0 : index
    %c0_2 = arith.constant 0 : index
    %1 = vector.load %arg3[%c0_1, %c0_2] : memref<32x32xf32, #tpu.memory_space<vmem>>, vector<32x32xf32>
    %cst = arith.constant dense<0.000000e+00> : vector<16x32xf32>
    %2 = tpu.matmul %0, %1, %cst {dimension_numbers = #tpu.dot_dimension_numbers<[1], [0], [0], [1], [0, 0, 1, 1], [], []>} : vector<16x32xf32>, vector<32x32xf32>, vector<16x32xf32> -> vector<16x32xf32>
    %c0_3 = arith.constant 0 : index
    %c0_4 = arith.constant 0 : index
    %3 = vector.load %arg4[%c0_3, %c0_4] : memref<1x32xf32, #tpu.memory_space<vmem>>, vector<1x32xf32>
    %4 = vector.broadcast %3 : vector<1x32xf32> to vector<16x32xf32>
    %5 = arith.addf %2, %4 : vector<16x32xf32>
    %c0_5 = arith.constant 0 : index
    %c0_6 = arith.constant 0 : index
    %6 = vector.load %arg5[%c0_5, %c0_6] : memref<16x32xf32, #tpu.memory_space<vmem>>, vector<16x32xf32>
    tpu.vector_store %arg5[%c0_5, %c0_6], %5 {strides = array<i32>} : memref<16x32xf32, #tpu.memory_space<vmem>>, vector<16x32xf32>,
    return
  }
  func.func @transform_0(%arg0: i32, %arg1: i32) -> (i32, i32) {
    %c0_i32 = arith.constant 0 : i32
    %c0_i32_0 = arith.constant 0 : i32
    return %arg0, %c0_i32 : i32, i32
  }
  func.func @transform_1(%arg0: i32, %arg1: i32) -> (i32, i32) {
    %c0_i32 = arith.constant 0 : i32
    %c0_i32_0 = arith.constant 0 : i32
    return %c0_i32, %arg1 : i32, i32
  }
  func.func @transform_2(%arg0: i32, %arg1: i32) -> (i32, i32) {
    %c0_i32 = arith.constant 0 : i32
    %c0_i32_0 = arith.constant 0 : i32
    return %c0_i32, %arg1 : i32, i32
  }
  func.func @transform_3(%arg0: i32, %arg1: i32) -> (i32, i32) {
    %c0_i32 = arith.constant 0 : i32
    return %arg0, %arg1 : i32, i32
  }
}

</mosaic_0001>

<llo_original>
// kernel: tpu_custom_call.1
$region0: #{tpu_custom_call.1}
  #allocation0 [shape = 'u32[]', space=smem, size = 0x4, offset = 0x4, fixed_abs, tag = 'smem constant byte address 0x4 - core index']
  #allocation1 [shape = 'u32[72,128]{1,0:T(1,128)}', space=vmem, size = 0x9000, scoped, tag = 'internal scratch']
  %s0 = inlined_call_operand.hbm [shape: f32[16,32], index: 0, kind: input, shape index: {}]
  %s1 = inlined_call_operand.hbm [shape: f32[32,32], index: 1, kind: input, shape index: {}]
  %s2 = inlined_call_operand.vmem [shape: f32[1,32], index: 2, kind: input, shape index: {}]
  %s3 = inlined_call_operand.hbm [shape: f32[16,32], index: 3, kind: output, shape index: {}]
  %s4 = sld [smem:[#allocation0]]
  $region30: #{tpu_custom_call.1} parent=0
    _
  %s6 = ssub.s32 1, %s4
  %s7 = scalar_select 0, %s6, %s4
  $region1: #{tpu_custom_call.1} parent=0
    #allocation2 [shape = 'u8[8192]{0}', space=vmem, size = 0x2000, scoped, tag = 'input window, operand 0, single buffered']
    #allocation3 [shape = 's32[1]{0}', space=sflag, size = 0x4, scoped, tag = 'scoped memory for tpu_custom_call.1']
    #allocation4 [shape = 's32[1]{0}', space=sflag, size = 0x4, scoped, tag = 'scoped memory for tpu_custom_call.1']
    #allocation5 [shape = 'u8[16384]{0}', space=vmem, size = 0x4000, scoped, tag = 'input window, operand 1, single buffered']
    #allocation6 [shape = 's32[1]{0}', space=sflag, size = 0x4, scoped, tag = 'scoped memory for tpu_custom_call.1']
    #allocation7 [shape = 'u8[8192]{0}', space=vmem, size = 0x2000, scoped, tag = 'output window, operand 0, single buffered']
    %8 = vsyncpa [#allocation3], 0
    %9 = vsyncpa [#allocation6], 0
    %10 = vsyncpa [#allocation4], 0
    // Predicated region
    $region2: #{tpu_custom_call.1} parent=1 // pred_check
      _
    $region3: #{tpu_custom_call.1} parent=1 // pred_check_branch
      %12 = sbr.rel (0) target = $region5
    $region4: #{tpu_custom_call.1} parent=1 // pred_region
      %14 = vsyncadd [#allocation3], 0
      %s15 = sshll.u32 %s0, 4
      %s16 = int_to_ptr.hbm [resolvable:$true] %s15
      %s17 = sshll.u32 [#allocation2], 4
      %s18 = int_to_ptr.vmem [resolvable:$true] %s17
      %23 = dma.hbm_to_vmem [thread:$0]  %s16, 256, %s18, [#allocation3], 128, 128, 8
    $region5: #{tpu_custom_call.1} parent=1 // pred_fallthru
      _
    // Predicated region
    $region6: #{tpu_custom_call.1} parent=1 // pred_check
      _
    $region7: #{tpu_custom_call.1} parent=1 // pred_check_branch
      %25 = sbr.rel (0) target = $region9
    $region8: #{tpu_custom_call.1} parent=1 // pred_region
      %27 = vsyncadd [#allocation6], 0
      %s28 = sshll.u32 %s1, 4
      %s29 = int_to_ptr.hbm [resolvable:$true] %s28
      %s30 = sshll.u32 [#allocation5], 4
      %s31 = int_to_ptr.vmem [resolvable:$true] %s30
      %36 = dma.hbm_to_vmem [thread:$0]  %s29, 512, %s31, [#allocation6], 128, 128, 8
    $region9: #{tpu_custom_call.1} parent=1 // pred_fallthru
      _
    // Predicated region
    $region10: #{tpu_custom_call.1} parent=1 // pred_check
      _
    $region11: #{tpu_custom_call.1} parent=1 // pred_check_branch
      %38 = sbr.rel (0) target = $region13
    $region12: #{tpu_custom_call.1} parent=1 // pred_region
      _
    $region13: #{tpu_custom_call.1} parent=1 // pred_fallthru
      _
    // Predicated region
    $region14: #{tpu_custom_call.1} parent=1 // pred_check
      _
    $region15: #{tpu_custom_call.1} parent=1 // pred_check_branch
      %40 = sbr.rel (0) target = $region17
    $region16: #{tpu_custom_call.1} parent=1 // pred_region
      %42 = dma.done [#allocation3], 256
    $region17: #{tpu_custom_call.1} parent=1 // pred_fallthru
      _
    // Predicated region
    $region18: #{tpu_custom_call.1} parent=1 // pred_check
      _
    $region19: #{tpu_custom_call.1} parent=1 // pred_check_branch
      %44 = sbr.rel (0) target = $region21
    $region20: #{tpu_custom_call.1} parent=1 // pred_region
      %46 = dma.done [#allocation6], 512
    $region21: #{tpu_custom_call.1} parent=1 // pred_fallthru
      _
    %v47 = vld [vmem:[#allocation2] sm:$0xff]
    %v48 = vld [vmem:[#allocation2 + $0x8] sm:$0xff]
    %v49 = vld [vmem:[#allocation5] sm:$0xff]
    %v50 = vld [vmem:[#allocation5 + $0x8] sm:$0xff]
    %v51 = vld [vmem:[#allocation5 + $0x10] sm:$0xff]
    %v52 = vld [vmem:[#allocation5 + $0x18] sm:$0xff]
    %v53 = vld [vmem:[%s2] sm:$0x1]
    %v55 = vperm.slane %v53, 0
    %vm57 = vcmask 261120
    %v59 = vsel %vm57, %v47, 0
    %v62 = vsel %vm57, %v48, 0
    %64 = vmatpush.msra.mxu0 0.0
    %65 = vmatpush.msra.mxu0 0.0
    %66 = vmatpush.msra.mxu0 0.0
    %67 = vmatpush.msra.mxu0 0.0
    %68 = vmatpush.msra.mxu0 0.0
    %69 = vmatpush.msra.mxu0 0.0
    %70 = vmatpush.msra.mxu0 0.0
    %71 = vmatpush.msra.mxu0 0.0
    %72 = vmatpush.msra.mxu0 0.0
    %73 = vmatpush.msra.mxu0 0.0
    %74 = vmatpush.msra.mxu0 0.0
    %75 = vmatpush.msra.mxu0 0.0
    %76 = vmatpush.msra.mxu0 %v52
    %77 = vmatpush.msra.mxu0 %v51
    %78 = vmatpush.msra.mxu0 %v50
    %79 = vmatpush.msra.mxu0 %v49
    %80 = vmatmul.f32.gmra.mxu0 %v59
    %v81 = vpop.f32.mrf.mxu0
    %v82 = vadd.f32 %v55, %v81
    %83 = vmatmul.f32.gmra.mxu0 %v62
    %v84 = vpop.f32.mrf.mxu0
    %v85 = vadd.f32 %v55, %v84
    %86 = vdwg.mxu0
    %87 = vst.msk [vmem:[#allocation7] sm:$0xff] %vm57, %v82
    %88 = vst.msk [vmem:[#allocation7 + $0x8] sm:$0xff] %vm57, %v85
    // Predicated region
    $region22: #{tpu_custom_call.1} parent=1 // pred_check
      _
    $region23: #{tpu_custom_call.1} parent=1 // pred_check_branch
      %90 = sbr.rel (0) target = $region25
    $region24: #{tpu_custom_call.1} parent=1 // pred_region
      %92 = vsyncadd [#allocation4], 0
      %s93 = sshll.u32 [#allocation7], 4
      %s94 = int_to_ptr.vmem [resolvable:$true] %s93
      %s95 = sshll.u32 %s3, 4
      %s96 = int_to_ptr.hbm [resolvable:$true] %s95
      %101 = dma.vmem_to_hbm [thread:$0]  %s94, 256, %s96, [#allocation4], 128, 128, 8
    $region25: #{tpu_custom_call.1} parent=1 // pred_fallthru
      _
    // Predicated region
    $region26: #{tpu_custom_call.1} parent=1 // pred_check
      _
    $region27: #{tpu_custom_call.1} parent=1 // pred_check_branch
      %103 = sbr.rel (0) target = $region29
    $region28: #{tpu_custom_call.1} parent=1 // pred_region
      %105 = dma.done [#allocation4], 256
    $region29: #{tpu_custom_call.1} parent=1 // pred_fallthru
      _
    %106 = vsyncpa [#allocation3], 1
    %107 = vsyncpa [#allocation6], 1
    %108 = vsyncpa [#allocation4], 1

</llo_original>
